<compile_context>
chip_gen: v5e
topology: v5e:2x2
jax: 0.10.0
libtpu: 0.0.40
codegen_flags: <defaults>
</compile_context>

<pallas_src>
import numpy as np
import jax
import jax.numpy as jnp
from jax.experimental import pallas as pl
from jax.experimental.pallas import tpu as pltpu

LANE = 128


def simple_classifier_kernel(x_ref, w1_ref, b1_ref, w2_ref, b2_ref,
                             wc_ref, bc_ref, out_ref):
    bt, n, f_in = x_ref.shape          # (B_TILE, N, in_dim) block
    hid = w1_ref.shape[1]
    inv_deg = 1.0 / float(n - 1)       # fully-connected, no self loops -> indeg = N-1

    x = x_ref[...]                                         # [bt, n, f_in]

    # --- GCN layer 1: leave-one-out mean over the other N-1 nodes, Linear + ReLU.
    s0 = jnp.sum(x, axis=1, keepdims=True)                 # [bt, 1, f_in]  (sublane reduce)
    agg0 = (s0 - x) * inv_deg                              # [bt, n, f_in]
    h1 = jnp.dot(agg0.reshape(bt * n, f_in), w1_ref[...],
                 preferred_element_type=jnp.float32) + b1_ref[...]
    h1 = jnp.maximum(h1, 0.0)                              # [bt*n, hid]

    # --- GCN layer 2.
    h1_3 = h1.reshape(bt, n, hid)
    s1 = jnp.sum(h1_3, axis=1, keepdims=True)
    agg1 = (s1 - h1_3) * inv_deg
    h2 = jnp.dot(agg1.reshape(bt * n, hid), w2_ref[...],
                 preferred_element_type=jnp.float32) + b2_ref[...]
    h2 = jnp.maximum(h2, 0.0)                              # [bt*n, hid]

    # --- readout: per-graph mean over nodes (dgl.mean_nodes), classify, sigmoid.
    hg = jnp.mean(h2.reshape(bt, n, hid), axis=1)          # [bt, hid]
    logits = jnp.dot(hg, wc_ref[...],
                     preferred_element_type=jnp.float32) + bc_ref[...]
    out_ref[...] = (1.0 / (1.0 + jnp.exp(-logits))).astype(out_ref.dtype)


def simple_classifier_forward(x, w1, b1, w2, b2, wc, bc, *, b_tile=16):
    """x: [B, N, in_dim] node features for B fully-connected graphs of N nodes."""
    B, N, F_in = x.shape
    H = w1.shape[1]
    C = wc.shape[1]
    assert B % b_tile == 0, "batch must be a multiple of b_tile"

    # Pad classifier weights/bias to a lane-dense output width; slice afterwards.
    C_pad = max(LANE, ((C + LANE - 1) // LANE) * LANE)
    wc_pad = jnp.zeros((H, C_pad), jnp.float32).at[:, :C].set(wc)
    bc_pad = jnp.zeros((1, C_pad), jnp.float32).at[:, :C].set(bc.reshape(1, C))
    b1_2 = b1.reshape(1, H)
    b2_2 = b2.reshape(1, H)

    out_pad = pl.pallas_call(
        simple_classifier_kernel,
        out_shape=jax.ShapeDtypeStruct((B, C_pad), jnp.float32),
        grid_spec=pl.GridSpec(
            grid=(B // b_tile,),
            in_specs=[
                pl.BlockSpec((b_tile, N, F_in), lambda b: (b, 0, 0)),  # node features
                pl.BlockSpec((F_in, H), lambda b: (0, 0)),             # W1
                pl.BlockSpec((1, H), lambda b: (0, 0)),                # b1
                pl.BlockSpec((H, H), lambda b: (0, 0)),                # W2
                pl.BlockSpec((1, H), lambda b: (0, 0)),                # b2
                pl.BlockSpec((H, C_pad), lambda b: (0, 0)),            # Wc (padded)
                pl.BlockSpec((1, C_pad), lambda b: (0, 0)),            # bc (padded)
            ],
            out_specs=pl.BlockSpec((b_tile, C_pad), lambda b: (b, 0)),
        ),
        compiler_params=pltpu.CompilerParams(
            dimension_semantics=("parallel",)),
    )(x, w1, b1_2, w2, b2_2, wc_pad, bc_pad)
    return out_pad[:, :C]


if __name__ == "__main__":
    # Small, deterministic shapes: 32 graphs x 8 nodes; 128-wide features so every
    # matmul operand / store is lane-dense and each grid step fills 128 MXU rows.
    B = 32           # graphs (grid = 2 steps of 16 graphs -> 128 rows each)
    N = 8            # nodes per graph (fully connected, no self loops)
    in_dim = 128
    hidden_dim = 128
    n_classes = 4

    key = jax.random.PRNGKey(0)
    kx, k1, k2, k3 = jax.random.split(key, 4)

    x = jax.random.normal(kx, (B, N, in_dim), dtype=jnp.float32)

    def linear_params(k, fan_in, fan_out):
        # nn.Linear init: weight [out, in], bias [out], uniform(-1/sqrt(in), 1/sqrt(in)).
        kw, kb = jax.random.split(k)
        bound = 1.0 / np.sqrt(fan_in)
        w_t = jax.random.uniform(kw, (fan_out, fan_in), minval=-bound, maxval=bound,
                                 dtype=jnp.float32)
        b = jax.random.uniform(kb, (fan_out,), minval=-bound, maxval=bound,
                               dtype=jnp.float32)
        return w_t.T, b          # [in, out] for right-multiplication in-kernel

    w1, b1 = linear_params(k1, in_dim, hidden_dim)
    w2, b2 = linear_params(k2, hidden_dim, hidden_dim)
    wc, bc = linear_params(k3, hidden_dim, n_classes)

    out = simple_classifier_forward(x, w1, b1, w2, b2, wc, bc, b_tile=16)
    out = jax.block_until_ready(out)

    # Pure-JAX reference of the exact module semantics.
    def gcn_ref(h, w, b):
        s = jnp.sum(h, axis=1, keepdims=True)
        agg = (s - h) / (h.shape[1] - 1)      # mean over incoming (all other) nodes
        return jnp.maximum(agg @ w + b, 0.0)

    h_ref = gcn_ref(x, w1, b1)
    h_ref = gcn_ref(h_ref, w2, b2)
    hg_ref = jnp.mean(h_ref, axis=1)          # dgl.mean_nodes
    ref = jax.nn.sigmoid(hg_ref @ wc + bc)

    assert out.shape == (B, n_classes)
    np.testing.assert_allclose(np.asarray(out), np.asarray(ref),
                               rtol=1e-4, atol=1e-4)

    print("KERNEL_OK")
</pallas_src>

<mosaic_0001>
module attributes {stable_mosaic.version = 11 : i64} {
  func.func @simple_classifier_kernel(%arg0: i32, %arg1: memref<16x8x128xf32, #tpu.memory_space<vmem>>, %arg2: memref<128x128xf32, #tpu.memory_space<vmem>>, %arg3: memref<1x128xf32, #tpu.memory_space<vmem>>, %arg4: memref<128x128xf32, #tpu.memory_space<vmem>>, %arg5: memref<1x128xf32, #tpu.memory_space<vmem>>, %arg6: memref<128x128xf32, #tpu.memory_space<vmem>>, %arg7: memref<1x128xf32, #tpu.memory_space<vmem>>, %arg8: memref<16x128xf32, #tpu.memory_space<vmem>>) attributes {dimension_semantics = [#tpu.dimension_semantics<parallel>], iteration_bounds = array<i64: 2>, scalar_prefetch = 0 : i64, scratch_operands = 0 : i64, tpu.core_type = #tpu.core_type<tc>, window_params = [{transform_indices = @transform_0, window_bounds = array<i64: 16, 8, 128>}, {pipeline_mode = #tpu.pipeline_mode<synchronous>, transform_indices = @transform_1, window_bounds = array<i64: 128, 128>}, {pipeline_mode = #tpu.pipeline_mode<synchronous>, transform_indices = @transform_2, window_bounds = array<i64: 1, 128>}, {pipeline_mode = #tpu.pipeline_mode<synchronous>, transform_indices = @transform_3, window_bounds = array<i64: 128, 128>}, {pipeline_mode = #tpu.pipeline_mode<synchronous>, transform_indices = @transform_4, window_bounds = array<i64: 1, 128>}, {pipeline_mode = #tpu.pipeline_mode<synchronous>, transform_indices = @transform_5, window_bounds = array<i64: 128, 128>}, {pipeline_mode = #tpu.pipeline_mode<synchronous>, transform_indices = @transform_6, window_bounds = array<i64: 1, 128>}, {transform_indices = @transform_7, window_bounds = array<i64: 16, 128>}]} {
    %c0 = arith.constant 0 : index
    %c0_0 = arith.constant 0 : index
    %c0_1 = arith.constant 0 : index
    %0 = vector.load %arg1[%c0, %c0_0, %c0_1] : memref<16x8x128xf32, #tpu.memory_space<vmem>>, vector<16x8x128xf32>
    %cst = arith.constant dense<0.000000e+00> : vector<16x128xf32>
    %1 = vector.multi_reduction <add>, %0, %cst [1] : vector<16x8x128xf32> to vector<16x128xf32>
    %2 = vector.shape_cast %1 : vector<16x128xf32> to vector<16x1x128xf32>
    %3 = vector.broadcast %2 : vector<16x1x128xf32> to vector<16x8x128xf32>
    %4 = arith.subf %3, %0 : vector<16x8x128xf32>
    %cst_2 = arith.constant 0.142857149 : f32
    %5 = vector.broadcast %cst_2 : f32 to vector<16x8x128xf32>
    %6 = arith.mulf %4, %5 : vector<16x8x128xf32>
    %7 = vector.shape_cast %6 : vector<16x8x128xf32> to vector<128x128xf32>
    %c0_3 = arith.constant 0 : index
    %c0_4 = arith.constant 0 : index
    %8 = vector.load %arg2[%c0_3, %c0_4] : memref<128x128xf32, #tpu.memory_space<vmem>>, vector<128x128xf32>
    %cst_5 = arith.constant dense<0.000000e+00> : vector<128x128xf32>
    %9 = tpu.matmul %7, %8, %cst_5 {dimension_numbers = #tpu.dot_dimension_numbers<[1], [0], [0], [1], [0, 0, 1, 1], [], []>} : vector<128x128xf32>, vector<128x128xf32>, vector<128x128xf32> -> vector<128x128xf32>
    %c0_6 = arith.constant 0 : index
    %c0_7 = arith.constant 0 : index
    %10 = vector.load %arg3[%c0_6, %c0_7] : memref<1x128xf32, #tpu.memory_space<vmem>>, vector<1x128xf32>
    %11 = vector.broadcast %10 : vector<1x128xf32> to vector<128x128xf32>
    %12 = arith.addf %9, %11 : vector<128x128xf32>
    %cst_8 = arith.constant 0.000000e+00 : f32
    %13 = vector.broadcast %cst_8 : f32 to vector<128x128xf32>
    %14 = arith.maximumf %12, %13 : vector<128x128xf32>
    %15 = vector.shape_cast %14 : vector<128x128xf32> to vector<16x8x128xf32>
    %cst_9 = arith.constant dense<0.000000e+00> : vector<16x128xf32>
    %16 = vector.multi_reduction <add>, %15, %cst_9 [1] : vector<16x8x128xf32> to vector<16x128xf32>
    %17 = vector.shape_cast %16 : vector<16x128xf32> to vector<16x1x128xf32>
    %18 = vector.broadcast %17 : vector<16x1x128xf32> to vector<16x8x128xf32>
    %19 = arith.subf %18, %15 : vector<16x8x128xf32>
    %cst_10 = arith.constant 0.142857149 : f32
    %20 = vector.broadcast %cst_10 : f32 to vector<16x8x128xf32>
    %21 = arith.mulf %19, %20 : vector<16x8x128xf32>
    %22 = vector.shape_cast %21 : vector<16x8x128xf32> to vector<128x128xf32>
    %c0_11 = arith.constant 0 : index
    %c0_12 = arith.constant 0 : index
    %23 = vector.load %arg4[%c0_11, %c0_12] : memref<128x128xf32, #tpu.memory_space<vmem>>, vector<128x128xf32>
    %cst_13 = arith.constant dense<0.000000e+00> : vector<128x128xf32>
    %24 = tpu.matmul %22, %23, %cst_13 {dimension_numbers = #tpu.dot_dimension_numbers<[1], [0], [0], [1], [0, 0, 1, 1], [], []>} : vector<128x128xf32>, vector<128x128xf32>, vector<128x128xf32> -> vector<128x128xf32>
    %c0_14 = arith.constant 0 : index
    %c0_15 = arith.constant 0 : index
    %25 = vector.load %arg5[%c0_14, %c0_15] : memref<1x128xf32, #tpu.memory_space<vmem>>, vector<1x128xf32>
    %26 = vector.broadcast %25 : vector<1x128xf32> to vector<128x128xf32>
    %27 = arith.addf %24, %26 : vector<128x128xf32>
    %cst_16 = arith.constant 0.000000e+00 : f32
    %28 = vector.broadcast %cst_16 : f32 to vector<128x128xf32>
    %29 = arith.maximumf %27, %28 : vector<128x128xf32>
    %30 = vector.shape_cast %29 : vector<128x128xf32> to vector<16x8x128xf32>
    %cst_17 = arith.constant dense<0.000000e+00> : vector<16x128xf32>
    %31 = vector.multi_reduction <add>, %30, %cst_17 [1] : vector<16x8x128xf32> to vector<16x128xf32>
    %cst_18 = arith.constant 8.000000e+00 : f32
    %32 = vector.broadcast %cst_18 : f32 to vector<16x128xf32>
    %33 = arith.divf %31, %32 : vector<16x128xf32>
    %c0_19 = arith.constant 0 : index
    %c0_20 = arith.constant 0 : index
    %34 = vector.load %arg6[%c0_19, %c0_20] : memref<128x128xf32, #tpu.memory_space<vmem>>, vector<128x128xf32>
    %cst_21 = arith.constant dense<0.000000e+00> : vector<16x128xf32>
    %35 = tpu.matmul %33, %34, %cst_21 {dimension_numbers = #tpu.dot_dimension_numbers<[1], [0], [0], [1], [0, 0, 1, 1], [], []>} : vector<16x128xf32>, vector<128x128xf32>, vector<16x128xf32> -> vector<16x128xf32>
    %c0_22 = arith.constant 0 : index
    %c0_23 = arith.constant 0 : index
    %36 = vector.load %arg7[%c0_22, %c0_23] : memref<1x128xf32, #tpu.memory_space<vmem>>, vector<1x128xf32>
    %37 = vector.broadcast %36 : vector<1x128xf32> to vector<16x128xf32>
    %38 = arith.addf %35, %37 : vector<16x128xf32>
    %cst_24 = arith.constant 0.000000e+00 : f32
    %39 = vector.broadcast %cst_24 : f32 to vector<16x128xf32>
    %40 = arith.subf %39, %38 : vector<16x128xf32>
    %41 = math.exp %40 : vector<16x128xf32>
    %cst_25 = arith.constant 1.000000e+00 : f32
    %42 = vector.broadcast %cst_25 : f32 to vector<16x128xf32>
    %43 = arith.addf %42, %41 : vector<16x128xf32>
    %cst_26 = arith.constant 1.000000e+00 : f32
    %44 = vector.broadcast %cst_26 : f32 to vector<16x128xf32>
    %45 = arith.divf %44, %43 : vector<16x128xf32>
    %c0_27 = arith.constant 0 : index
    %c0_28 = arith.constant 0 : index
    %46 = vector.load %arg8[%c0_27, %c0_28] : memref<16x128xf32, #tpu.memory_space<vmem>>, vector<16x128xf32>
    tpu.vector_store %arg8[%c0_27, %c0_28], %45 {strides = array<i32>} : memref<16x128xf32, #tpu.memory_space<vmem>>, vector<16x128xf32>,
    return
  }
  func.func @transform_0(%arg0: i32) -> (i32, i32, i32) {
    %c0_i32 = arith.constant 0 : i32
    %c0_i32_0 = arith.constant 0 : i32
    %c0_i32_1 = arith.constant 0 : i32
    return %arg0, %c0_i32, %c0_i32_0 : i32, i32, i32
  }
  func.func @transform_1(%arg0: i32) -> (i32, i32) {
    %c0_i32 = arith.constant 0 : i32
    %c0_i32_0 = arith.constant 0 : i32
    %c0_i32_1 = arith.constant 0 : i32
    return %c0_i32, %c0_i32_0 : i32, i32
  }
  func.func @transform_2(%arg0: i32) -> (i32, i32) {
    %c0_i32 = arith.constant 0 : i32
    %c0_i32_0 = arith.constant 0 : i32
    %c0_i32_1 = arith.constant 0 : i32
    return %c0_i32, %c0_i32_0 : i32, i32
  }
  func.func @transform_3(%arg0: i32) -> (i32, i32) {
    %c0_i32 = arith.constant 0 : i32
    %c0_i32_0 = arith.constant 0 : i32
    %c0_i32_1 = arith.constant 0 : i32
    return %c0_i32, %c0_i32_0 : i32, i32
  }
  func.func @transform_4(%arg0: i32) -> (i32, i32) {
    %c0_i32 = arith.constant 0 : i32
    %c0_i32_0 = arith.constant 0 : i32
    %c0_i32_1 = arith.constant 0 : i32
    return %c0_i32, %c0_i32_0 : i32, i32
  }
  func.func @transform_5(%arg0: i32) -> (i32, i32) {
    %c0_i32 = arith.constant 0 : i32
    %c0_i32_0 = arith.constant 0 : i32
    %c0_i32_1 = arith.constant 0 : i32
    return %c0_i32, %c0_i32_0 : i32, i32
  }
  func.func @transform_6(%arg0: i32) -> (i32, i32) {
    %c0_i32 = arith.constant 0 : i32
    %c0_i32_0 = arith.constant 0 : i32
    %c0_i32_1 = arith.constant 0 : i32
    return %c0_i32, %c0_i32_0 : i32, i32
  }
  func.func @transform_7(%arg0: i32) -> (i32, i32) {
    %c0_i32 = arith.constant 0 : i32
    %c0_i32_0 = arith.constant 0 : i32
    return %arg0, %c0_i32 : i32, i32
  }
}

</mosaic_0001>

<llo_original>
// kernel: tpu_custom_call.1
$region0: #{tpu_custom_call.1}
  #allocation0 [shape = 'u32[]', space=smem, size = 0x4, offset = 0x4, fixed_abs, tag = 'smem constant byte address 0x4 - core index']
  #allocation1 [shape = 'u32[72,128]{1,0:T(1,128)}', space=vmem, size = 0x9000, scoped, tag = 'internal scratch']
  %s0 = inlined_call_operand.hbm [shape: f32[32,8,128], index: 0, kind: input, shape index: {}]
  %s1 = inlined_call_operand.hbm [shape: f32[128,128], index: 1, kind: input, shape index: {}]
  %s2 = inlined_call_operand.vmem [shape: f32[1,128], index: 2, kind: input, shape index: {}]
  %s3 = inlined_call_operand.hbm [shape: f32[128,128], index: 3, kind: input, shape index: {}]
  %s4 = inlined_call_operand.vmem [shape: f32[1,128], index: 4, kind: input, shape index: {}]
  %s5 = inlined_call_operand.hbm [shape: f32[128,128], index: 5, kind: input, shape index: {}]
  %s6 = inlined_call_operand.vmem [shape: f32[1,128], index: 6, kind: input, shape index: {}]
  %s7 = inlined_call_operand.hbm [shape: f32[32,128], index: 7, kind: output, shape index: {}]
  %s8 = sld [smem:[#allocation0]]
  $region77: #{tpu_custom_call.1} parent=0
    _
  %s10 = ssub.s32 1, %s8
  %s11 = scalar_select 0, %s10, %s8
  $region1: #{tpu_custom_call.1} parent=0
    #allocation2 [shape = 'u8[131072]{0}', space=vmem, size = 0x20000, scoped, tag = 'input window, operand 0']
    #allocation3 [shape = 's32[2]{0}', space=sflag, size = 0x8, scoped, tag = 'scoped memory for tpu_custom_call.1']
    #allocation4 [shape = 's32[2]{0}', space=sflag, size = 0x8, scoped, tag = 'scoped memory for tpu_custom_call.1']
    #allocation5 [shape = 'u8[65536]{0}', space=vmem, size = 0x10000, scoped, tag = 'input window, operand 1, single buffered']
    #allocation6 [shape = 's32[1]{0}', space=sflag, size = 0x4, scoped, tag = 'scoped memory for tpu_custom_call.1']
    #allocation7 [shape = 'u8[65536]{0}', space=vmem, size = 0x10000, scoped, tag = 'input window, operand 3, single buffered']
    #allocation8 [shape = 'u8[65536]{0}', space=vmem, size = 0x10000, scoped, tag = 'input window, operand 5, single buffered']
    #allocation9 [shape = 's32[1]{0}', space=sflag, size = 0x4, scoped, tag = 'scoped memory for tpu_custom_call.1']
    #allocation10 [shape = 'u8[16384]{0}', space=vmem, size = 0x4000, scoped, tag = 'output window, operand 0']
    %12 = vsyncpa [#allocation3], 0
    %s13 = scalar_lea.sflag [#allocation3], 1
    %14 = vsyncpa %s13, 0
    %15 = vsyncpa [#allocation6], 0
    %16 = vsyncpa [#allocation9], 0
    %17 = vsyncpa [#allocation4], 0
    %s18 = scalar_lea.sflag [#allocation4], 1
    %19 = vsyncpa %s18, 0
    loop: start=0, step=1, limit=4
    $region2: #{tpu_custom_call.1} parent=1 // loop_pre_header
      _
    $region3: #{tpu_custom_call.1} parent=1 // loop_header
      %s21 = sphi 0, %s25
      %p22 = scmp.ge.s32.totalorder %s21, 4
      %s31 = sphi 0, %s33
      %s34 = sphi 0, %s31
      %s35 = sphi 0, %s34
      %s51 = sphi 0, %s35
      %s55 = sphi 0, %s55
      %s57 = sphi 0, %s55
      %s58 = sphi 0, %s57
      %s72 = sphi 0, %s58
      %s76 = sphi 0, %s76
      %s78 = sphi 0, %s76
      %s79 = sphi 0, %s78
      %s93 = sphi 0, %s79
      %s97 = sphi 0, %s97
      %s99 = sphi 0, %s97
      %s100 = sphi 0, %s99
      %s114 = sphi 0, %s100
      %s118 = sphi 0, %s118
      %s120 = sphi 0, %s118
      %s121 = sphi 0, %s120
      %s135 = sphi 0, %s121
      %s139 = sphi 0, %s139
      %s141 = sphi 0, %s139
      %s142 = sphi 0, %s141
      %s156 = sphi 0, %s142
      %s160 = sphi 0, %s160
      %s162 = sphi 0, %s160
      %s163 = sphi 0, %s162
      %s177 = sphi 0, %s163
      %s183 = sphi 0, %s185
      %s186 = sphi 0, %s183
      %s187 = sphi 0, %s186
      %s203 = sphi 0, %s187
    $region4: #{tpu_custom_call.1} parent=1 // loop_header_branch
      %24 = sbr.rel (%p22) target = $region8
    $region5: #{tpu_custom_call.1} parent=1 // loop_body
      %s26 = ssub.s32 %s21, 1
      %s27 = ssub.s32 %s21, 2
      %s28 = sadd.s32 %s21, 1
      %s29 = ssub.s32 %s21, %s28
      %p30 = scmp.eq.s32.totalorder %s29, 0
      %s32 = sadd.s32 %s31, 1
      %s33 = scalar_select %p30, %s31, %s32
      %p36 = pneg %p30
      %p37 = scmp.eq.s32.totalorder %s21, 1
      %p38 = por %p36, %p37
      %p39 = scmp.ne.s32.totalorder %s31, %s34
      %p40 = scmp.eq.s32.totalorder %s21, 0
      %p41 = por %p39, %p40
      %p42 = scmp.ne.s32.totalorder %s31, %s34
      %p43 = scmp.eq.s32.totalorder %s26, 1
      %p44 = por %p42, %p43
      %p45 = scmp.ne.s32.totalorder %s34, %s35
      %p46 = scmp.eq.s32.totalorder %s26, 0
      %p47 = por %p45, %p46
      %p48 = scmp.ne.s32.totalorder %s34, %s35
      %p49 = scmp.eq.s32.totalorder %s27, 1
      %p50 = por %p48, %p49
      %p52 = scmp.ne.s32.totalorder %s35, %s51
      %p53 = scmp.eq.s32.totalorder %s27, 0
      %p54 = por %p52, %p53
      %s56 = sadd.s32 %s55, 1
      %p59 = scmp.eq.s32.totalorder %s21, 1
      %p60 = scmp.ne.s32.totalorder %s55, %s57
      %p61 = scmp.eq.s32.totalorder %s21, 0
      %p62 = por %p60, %p61
      %p63 = scmp.ne.s32.totalorder %s55, %s57
      %p64 = scmp.eq.s32.totalorder %s26, 1
      %p65 = por %p63, %p64
      %p66 = scmp.ne.s32.totalorder %s57, %s58
      %p67 = scmp.eq.s32.totalorder %s26, 0
      %p68 = por %p66, %p67
      %p69 = scmp.ne.s32.totalorder %s57, %s58
      %p70 = scmp.eq.s32.totalorder %s27, 1
      %p71 = por %p69, %p70
      %p73 = scmp.ne.s32.totalorder %s58, %s72
      %p74 = scmp.eq.s32.totalorder %s27, 0
      %p75 = por %p73, %p74
      %s77 = sadd.s32 %s76, 1
      %p80 = scmp.eq.s32.totalorder %s21, 1
      %p81 = scmp.ne.s32.totalorder %s76, %s78
      %p82 = scmp.eq.s32.totalorder %s21, 0
      %p83 = por %p81, %p82
      %p84 = scmp.ne.s32.totalorder %s76, %s78
      %p85 = scmp.eq.s32.totalorder %s26, 1
      %p86 = por %p84, %p85
      %p87 = scmp.ne.s32.totalorder %s78, %s79
      %p88 = scmp.eq.s32.totalorder %s26, 0
      %p89 = por %p87, %p88
      %p90 = scmp.ne.s32.totalorder %s78, %s79
      %p91 = scmp.eq.s32.totalorder %s27, 1
      %p92 = por %p90, %p91
      %p94 = scmp.ne.s32.totalorder %s79, %s93
      %p95 = scmp.eq.s32.totalorder %s27, 0
      %p96 = por %p94, %p95
      %s98 = sadd.s32 %s97, 1
      %p101 = scmp.eq.s32.totalorder %s21, 1
      %p102 = scmp.ne.s32.totalorder %s97, %s99
      %p103 = scmp.eq.s32.totalorder %s21, 0
      %p104 = por %p102, %p103
      %p105 = scmp.ne.s32.totalorder %s97, %s99
      %p106 = scmp.eq.s32.totalorder %s26, 1
      %p107 = por %p105, %p106
      %p108 = scmp.ne.s32.totalorder %s99, %s100
      %p109 = scmp.eq.s32.totalorder %s26, 0
      %p110 = por %p108, %p109
      %p111 = scmp.ne.s32.totalorder %s99, %s100
      %p112 = scmp.eq.s32.totalorder %s27, 1
      %p113 = por %p111, %p112
      %p115 = scmp.ne.s32.totalorder %s100, %s114
      %p116 = scmp.eq.s32.totalorder %s27, 0
      %p117 = por %p115, %p116
      %s119 = sadd.s32 %s118, 1
      %p122 = scmp.eq.s32.totalorder %s21, 1
      %p123 = scmp.ne.s32.totalorder %s118, %s120
      %p124 = scmp.eq.s32.totalorder %s21, 0
      %p125 = por %p123, %p124
      %p126 = scmp.ne.s32.totalorder %s118, %s120
      %p127 = scmp.eq.s32.totalorder %s26, 1
      %p128 = por %p126, %p127
      %p129 = scmp.ne.s32.totalorder %s120, %s121
      %p130 = scmp.eq.s32.totalorder %s26, 0
      %p131 = por %p129, %p130
      %p132 = scmp.ne.s32.totalorder %s120, %s121
      %p133 = scmp.eq.s32.totalorder %s27, 1
      %p134 = por %p132, %p133
      %p136 = scmp.ne.s32.totalorder %s121, %s135
      %p137 = scmp.eq.s32.totalorder %s27, 0
      %p138 = por %p136, %p137
      %s140 = sadd.s32 %s139, 1
      %p143 = scmp.eq.s32.totalorder %s21, 1
      %p144 = scmp.ne.s32.totalorder %s139, %s141
      %p145 = scmp.eq.s32.totalorder %s21, 0
      %p146 = por %p144, %p145
      %p147 = scmp.ne.s32.totalorder %s139, %s141
      %p148 = scmp.eq.s32.totalorder %s26, 1
      %p149 = por %p147, %p148
      %p150 = scmp.ne.s32.totalorder %s141, %s142
      %p151 = scmp.eq.s32.totalorder %s26, 0
      %p152 = por %p150, %p151
      %p153 = scmp.ne.s32.totalorder %s141, %s142
      %p154 = scmp.eq.s32.totalorder %s27, 1
      %p155 = por %p153, %p154
      %p157 = scmp.ne.s32.totalorder %s142, %s156
      %p158 = scmp.eq.s32.totalorder %s27, 0
      %p159 = por %p157, %p158
      %s161 = sadd.s32 %s160, 1
      %p164 = scmp.eq.s32.totalorder %s21, 1
      %p165 = scmp.ne.s32.totalorder %s160, %s162
      %p166 = scmp.eq.s32.totalorder %s21, 0
      %p167 = por %p165, %p166
      %p168 = scmp.ne.s32.totalorder %s160, %s162
      %p169 = scmp.eq.s32.totalorder %s26, 1
      %p170 = por %p168, %p169
      %p171 = scmp.ne.s32.totalorder %s162, %s163
      %p172 = scmp.eq.s32.totalorder %s26, 0
      %p173 = por %p171, %p172
      %p174 = scmp.ne.s32.totalorder %s162, %s163
      %p175 = scmp.eq.s32.totalorder %s27, 1
      %p176 = por %p174, %p175
      %p178 = scmp.ne.s32.totalorder %s163, %s177
      %p179 = scmp.eq.s32.totalorder %s27, 0
      %p180 = por %p178, %p179
      %s181 = ssub.s32 %s21, %s28
      %p182 = scmp.eq.s32.totalorder %s181, 0
      %s184 = sadd.s32 %s183, 1
      %s185 = scalar_select %p182, %s183, %s184
      %p188 = pneg %p182
      %p189 = scmp.eq.s32.totalorder %s21, 1
      %p190 = por %p188, %p189
      %p191 = scmp.ne.s32.totalorder %s183, %s186
      %p192 = scmp.eq.s32.totalorder %s21, 0
      %p193 = por %p191, %p192
      %p194 = scmp.ne.s32.totalorder %s183, %s186
      %p195 = scmp.eq.s32.totalorder %s26, 1
      %p196 = por %p194, %p195
      %p197 = scmp.ne.s32.totalorder %s186, %s187
      %p198 = scmp.eq.s32.totalorder %s26, 0
      %p199 = por %p197, %p198
      %p200 = scmp.ne.s32.totalorder %s186, %s187
      %p201 = scmp.eq.s32.totalorder %s27, 1
      %p202 = por %p200, %p201
      %p204 = scmp.ne.s32.totalorder %s187, %s203
      %p205 = scmp.eq.s32.totalorder %s27, 0
      %p206 = por %p204, %p205
      %p207 = scmp.le.s32.totalorder 1, %s21
      %p208 = scmp.lt.s32.totalorder %s21, 3
      %p209 = pnand %p207, %p208
      %p210 = pneg %p209
      // Predicated region
      $region9: #{tpu_custom_call.1} parent=5 // pred_check
        _
      $region10: #{tpu_custom_call.1} parent=5 // pred_check_branch
        %212 = sbr.rel (%p209) target = $region12
      $region11: #{tpu_custom_call.1} parent=5 // pred_region
        %s213 = ssub.s32 %s21, 1
        // Predicated region
        $region13: #{tpu_custom_call.1} parent=11 // pred_check
          %p214 = pneg %p68
        $region14: #{tpu_custom_call.1} parent=11 // pred_check_branch
          %216 = sbr.rel (%p214) target = $region16
        $region15: #{tpu_custom_call.1} parent=11 // pred_region
          %218 = vsyncadd [#allocation6], 0
          %s219 = sshll.u32 %s1, 4
          %s220 = int_to_ptr.hbm [resolvable:$true] %s219
          %s221 = sshll.u32 [#allocation5], 4
          %s222 = int_to_ptr.vmem [resolvable:$true] %s221
          %227 = dma.hbm_to_vmem [thread:$0]  %s220, 2048, %s222, [#allocation6], 128, 128, 8
        $region16: #{tpu_custom_call.1} parent=11 // pred_fallthru
          _
        // Predicated region
        $region17: #{tpu_custom_call.1} parent=11 // pred_check
          %p228 = pneg %p89
        $region18: #{tpu_custom_call.1} parent=11 // pred_check_branch
          %230 = sbr.rel (%p228) target = $region20
        $region19: #{tpu_custom_call.1} parent=11 // pred_region
          _
        $region20: #{tpu_custom_call.1} parent=11 // pred_fallthru
          _
        // Predicated region
        $region21: #{tpu_custom_call.1} parent=11 // pred_check
          %p231 = pneg %p110
        $region22: #{tpu_custom_call.1} parent=11 // pred_check_branch
          %233 = sbr.rel (%p231) target = $region24
        $region23: #{tpu_custom_call.1} parent=11 // pred_region
          %235 = vsyncadd [#allocation6], 0
          %s236 = sshll.u32 %s3, 4
          %s237 = int_to_ptr.hbm [resolvable:$true] %s236
          %s238 = sshll.u32 [#allocation7], 4
          %s239 = int_to_ptr.vmem [resolvable:$true] %s238
          %244 = dma.hbm_to_vmem [thread:$0]  %s237, 2048, %s239, [#allocation6], 128, 128, 8
        $region24: #{tpu_custom_call.1} parent=11 // pred_fallthru
          _
        // Predicated region
        $region25: #{tpu_custom_call.1} parent=11 // pred_check
          %p245 = pneg %p131
        $region26: #{tpu_custom_call.1} parent=11 // pred_check_branch
          %247 = sbr.rel (%p245) target = $region28
        $region27: #{tpu_custom_call.1} parent=11 // pred_region
          _
        $region28: #{tpu_custom_call.1} parent=11 // pred_fallthru
          _
        // Predicated region
        $region29: #{tpu_custom_call.1} parent=11 // pred_check
          %p248 = pneg %p152
        $region30: #{tpu_custom_call.1} parent=11 // pred_check_branch
          %250 = sbr.rel (%p248) target = $region32
        $region31: #{tpu_custom_call.1} parent=11 // pred_region
          %252 = vsyncadd [#allocation9], 0
          %s253 = sshll.u32 %s5, 4
          %s254 = int_to_ptr.hbm [resolvable:$true] %s253
          %s255 = sshll.u32 [#allocation8], 4
          %s256 = int_to_ptr.vmem [resolvable:$true] %s255
          %261 = dma.hbm_to_vmem [thread:$0]  %s254, 2048, %s256, [#allocation9], 128, 128, 8
        $region32: #{tpu_custom_call.1} parent=11 // pred_fallthru
          _
        // Predicated region
        $region33: #{tpu_custom_call.1} parent=11 // pred_check
          %p262 = pneg %p173
        $region34: #{tpu_custom_call.1} parent=11 // pred_check_branch
          %264 = sbr.rel (%p262) target = $region36
        $region35: #{tpu_custom_call.1} parent=11 // pred_region
          _
        $region36: #{tpu_custom_call.1} parent=11 // pred_fallthru
          _
      $region12: #{tpu_custom_call.1} parent=5 // pred_fallthru
        _
      %p265 = scmp.lt.s32.totalorder %s21, 2
      // Predicated region
      $region37: #{tpu_custom_call.1} parent=5 // pred_check
        %p266 = pneg %p265
      $region38: #{tpu_custom_call.1} parent=5 // pred_check_branch
        %268 = sbr.rel (%p266) target = $region40
      $region39: #{tpu_custom_call.1} parent=5 // pred_region
        // Predicated region
        $region41: #{tpu_custom_call.1} parent=39 // pred_check
          %p269 = pneg %p41
        $region42: #{tpu_custom_call.1} parent=39 // pred_check_branch
          %271 = sbr.rel (%p269) target = $region44
        $region43: #{tpu_custom_call.1} parent=39 // pred_region
          %s272 = sand.u32 %s31, 1
          %s273 = scalar_lea.sflag [#allocation3], %s272
          %s274 = sand.u32 %s31, 1
          %s275 = smul.addr %s274, 128
          %s276 = scalar_lea.vmem [#allocation2], %s275
          %s277 = smul.u32 16, %s21
          %279 = vsyncadd %s273, 0
          %s280 = smul.addr %s277, 8
          %s281 = scalar_lea.hbm %s0, %s280
          %s282 = sshll.u32 %s281, 4
          %s283 = int_to_ptr.hbm [resolvable:$true] %s282
          %s284 = sshll.u32 %s276, 4
          %s285 = int_to_ptr.vmem [resolvable:$true] %s284
          %290 = dma.hbm_to_vmem [thread:$0]  %s283, 2048, %s285, %s273, 128, 128, 8
        $region44: #{tpu_custom_call.1} parent=39 // pred_fallthru
          _
      $region40: #{tpu_custom_call.1} parent=5 // pred_fallthru
        _
      %p291 = scmp.le.s32.totalorder 1, %s21
      %p292 = scmp.lt.s32.totalorder %s21, 3
      %p293 = pnand %p291, %p292
      %p294 = pneg %p293
      // Predicated region
      $region45: #{tpu_custom_call.1} parent=5 // pred_check
        _
      $region46: #{tpu_custom_call.1} parent=5 // pred_check_branch
        %296 = sbr.rel (%p293) target = $region48
      $region47: #{tpu_custom_call.1} parent=5 // pred_region
        %s297 = ssub.s32 %s21, 1
        %s298 = sand.u32 %s34, 1
        %s299 = scalar_lea.sflag [#allocation3], %s298
        %s300 = sand.u32 %s34, 1
        %s301 = smul.addr %s300, 128
        %s302 = scalar_lea.vmem [#allocation2], %s301
        // Predicated region
        $region49: #{tpu_custom_call.1} parent=47 // pred_check
          %p303 = pneg %p47
        $region50: #{tpu_custom_call.1} parent=47 // pred_check_branch
          %305 = sbr.rel (%p303) target = $region52
        $region51: #{tpu_custom_call.1} parent=47 // pred_region
          %307 = dma.done %s299, 2048
        $region52: #{tpu_custom_call.1} parent=47 // pred_fallthru
          _
        // Predicated region
        $region53: #{tpu_custom_call.1} parent=47 // pred_check
          %p308 = pneg %p68
        $region54: #{tpu_custom_call.1} parent=47 // pred_check_branch
          %310 = sbr.rel (%p308) target = $region56
        $region55: #{tpu_custom_call.1} parent=47 // pred_region
          %312 = dma.done [#allocation6], 2048
        $region56: #{tpu_custom_call.1} parent=47 // pred_fallthru
          _
        // Predicated region
        $region57: #{tpu_custom_call.1} parent=47 // pred_check
          %p313 = pneg %p110
        $region58: #{tpu_custom_call.1} parent=47 // pred_check_branch
          %315 = sbr.rel (%p313) target = $region60
        $region59: #{tpu_custom_call.1} parent=47 // pred_region
          %317 = dma.done [#allocation6], 2048
        $region60: #{tpu_custom_call.1} parent=47 // pred_fallthru
          _
        // Predicated region
        $region61: #{tpu_custom_call.1} parent=47 // pred_check
          %p318 = pneg %p152
        $region62: #{tpu_custom_call.1} parent=47 // pred_check_branch
          %320 = sbr.rel (%p318) target = $region64
        $region63: #{tpu_custom_call.1} parent=47 // pred_region
          %322 = dma.done [#allocation9], 2048
        $region64: #{tpu_custom_call.1} parent=47 // pred_fallthru
          _
        %s323 = sand.u32 %s34, 1
        %s324 = scalar_lea.sflag [#allocation3], %s323
        %s325 = sand.u32 %s34, 1
        %s326 = smul.addr %s325, 128
        %s327 = scalar_lea.vmem [#allocation2], %s326
        %p328 = pneg %p47
        %p329 = pneg %p44
        %p330 = pneg %p68
        %p331 = pneg %p65
        %p332 = pneg %p89
        %p333 = pneg %p86
        %p334 = pneg %p110
        %p335 = pneg %p107
        %p336 = pneg %p131
        %p337 = pneg %p128
        %p338 = pneg %p152
        %p339 = pneg %p149
        %p340 = pneg %p173
        %p341 = pneg %p170
        %p342 = pneg %p199
        %p343 = pneg %p196
        %s344 = sand.u32 %s186, 1
        %s345 = scalar_lea.sflag [#allocation4], %s344
        %s346 = sand.u32 %s186, 1
        %s347 = smul.addr %s346, 16
        %s348 = scalar_lea.vmem [#allocation10], %s347
        %s349 = smul.u32 16, %s26
        %s350 = smul.u32 2, %s26
        %v351 = vld [vmem:[%s302] sm:$0xff]
        %v352 = vld [vmem:[%s302 + $0x8] sm:$0xff]
        %v353 = vld [vmem:[%s302 + $0x10] sm:$0xff]
        %v354 = vld [vmem:[%s302 + $0x18] sm:$0xff]
        %v355 = vld [vmem:[%s302 + $0x20] sm:$0xff]
        %v356 = vld [vmem:[%s302 + $0x28] sm:$0xff]
        %v357 = vld [vmem:[%s302 + $0x30] sm:$0xff]
        %v358 = vld [vmem:[%s302 + $0x38] sm:$0xff]
        %v359 = vld [vmem:[%s302 + $0x40] sm:$0xff]
        %v360 = vld [vmem:[%s302 + $0x48] sm:$0xff]
        %v361 = vld [vmem:[%s302 + $0x50] sm:$0xff]
        %v362 = vld [vmem:[%s302 + $0x58] sm:$0xff]
        %v363 = vld [vmem:[%s302 + $0x60] sm:$0xff]
        %v364 = vld [vmem:[%s302 + $0x68] sm:$0xff]
        %v365 = vld [vmem:[%s302 + $0x70] sm:$0xff]
        %v366 = vld [vmem:[%s302 + $0x78] sm:$0xff]
        %v367 = vrot.slane %v351, 4
        %v368 = vadd.f32 %v351, %v367
        %v369 = vrot.slane %v368, 2
        %v370 = vadd.f32 %v368, %v369
        %v371 = vrot.slane %v370, 1
        %v372 = vadd.f32 %v370, %v371
        %v373 = vrot.slane %v352, 4
        %v374 = vadd.f32 %v352, %v373
        %v375 = vrot.slane %v374, 2
        %v376 = vadd.f32 %v374, %v375
        %v377 = vrot.slane %v376, 1
        %v378 = vadd.f32 %v376, %v377
        %v379 = vrot.slane %v353, 4
        %v380 = vadd.f32 %v353, %v379
        %v381 = vrot.slane %v380, 2
        %v382 = vadd.f32 %v380, %v381
        %v383 = vrot.slane %v382, 1
        %v384 = vadd.f32 %v382, %v383
        %v385 = vrot.slane %v354, 4
        %v386 = vadd.f32 %v354, %v385
        %v387 = vrot.slane %v386, 2
        %v388 = vadd.f32 %v386, %v387
        %v389 = vrot.slane %v388, 1
        %v390 = vadd.f32 %v388, %v389
        %v391 = vrot.slane %v355, 4
        %v392 = vadd.f32 %v355, %v391
        %v393 = vrot.slane %v392, 2
        %v394 = vadd.f32 %v392, %v393
        %v395 = vrot.slane %v394, 1
        %v396 = vadd.f32 %v394, %v395
        %v397 = vrot.slane %v356, 4
        %v398 = vadd.f32 %v356, %v397
        %v399 = vrot.slane %v398, 2
        %v400 = vadd.f32 %v398, %v399
        %v401 = vrot.slane %v400, 1
        %v402 = vadd.f32 %v400, %v401
        %v403 = vrot.slane %v357, 4
        %v404 = vadd.f32 %v357, %v403
        %v405 = vrot.slane %v404, 2
        %v406 = vadd.f32 %v404, %v405
        %v407 = vrot.slane %v406, 1
        %v408 = vadd.f32 %v406, %v407
        %v409 = vrot.slane %v358, 4
        %v410 = vadd.f32 %v358, %v409
        %v411 = vrot.slane %v410, 2
        %v412 = vadd.f32 %v410, %v411
        %v413 = vrot.slane %v412, 1
        %v414 = vadd.f32 %v412, %v413
        %v415 = vrot.slane %v359, 4
        %v416 = vadd.f32 %v359, %v415
        %v417 = vrot.slane %v416, 2
        %v418 = vadd.f32 %v416, %v417
        %v419 = vrot.slane %v418, 1
        %v420 = vadd.f32 %v418, %v419
        %v421 = vrot.slane %v360, 4
        %v422 = vadd.f32 %v360, %v421
        %v423 = vrot.slane %v422, 2
        %v424 = vadd.f32 %v422, %v423
        %v425 = vrot.slane %v424, 1
        %v426 = vadd.f32 %v424, %v425
        %v427 = vrot.slane %v361, 4
        %v428 = vadd.f32 %v361, %v427
        %v429 = vrot.slane %v428, 2
        %v430 = vadd.f32 %v428, %v429
        %v431 = vrot.slane %v430, 1
        %v432 = vadd.f32 %v430, %v431
        %v433 = vrot.slane %v362, 4
        %v434 = vadd.f32 %v362, %v433
        %v435 = vrot.slane %v434, 2
        %v436 = vadd.f32 %v434, %v435
        %v437 = vrot.slane %v436, 1
        %v438 = vadd.f32 %v436, %v437
        %v439 = vrot.slane %v363, 4
        %v440 = vadd.f32 %v363, %v439
        %v441 = vrot.slane %v440, 2
        %v442 = vadd.f32 %v440, %v441
        %v443 = vrot.slane %v442, 1
        %v444 = vadd.f32 %v442, %v443
        %v445 = vrot.slane %v364, 4
        %v446 = vadd.f32 %v364, %v445
        %v447 = vrot.slane %v446, 2
        %v448 = vadd.f32 %v446, %v447
        %v449 = vrot.slane %v448, 1
        %v450 = vadd.f32 %v448, %v449
        %v451 = vrot.slane %v365, 4
        %v452 = vadd.f32 %v365, %v451
        %v453 = vrot.slane %v452, 2
        %v454 = vadd.f32 %v452, %v453
        %v455 = vrot.slane %v454, 1
        %v456 = vadd.f32 %v454, %v455
        %v457 = vrot.slane %v366, 4
        %v458 = vadd.f32 %v366, %v457
        %v459 = vrot.slane %v458, 2
        %v460 = vadd.f32 %v458, %v459
        %v461 = vrot.slane %v460, 1
        %v462 = vadd.f32 %v460, %v461
        %v463 = vsub.f32 %v372, %v351
        %v464 = vsub.f32 %v378, %v352
        %v465 = vsub.f32 %v384, %v353
        %v466 = vsub.f32 %v390, %v354
        %v467 = vsub.f32 %v396, %v355
        %v468 = vsub.f32 %v402, %v356
        %v469 = vsub.f32 %v408, %v357
        %v470 = vsub.f32 %v414, %v358
        %v471 = vsub.f32 %v420, %v359
        %v472 = vsub.f32 %v426, %v360
        %v473 = vsub.f32 %v432, %v361
        %v474 = vsub.f32 %v438, %v362
        %v475 = vsub.f32 %v444, %v363
        %v476 = vsub.f32 %v450, %v364
        %v477 = vsub.f32 %v456, %v365
        %v478 = vsub.f32 %v462, %v366
        %v479 = vmul.f32 %v463, 0.14285715
        %v480 = vmul.f32 %v464, 0.14285715
        %v481 = vmul.f32 %v465, 0.14285715
        %v482 = vmul.f32 %v466, 0.14285715
        %v483 = vmul.f32 %v467, 0.14285715
        %v484 = vmul.f32 %v468, 0.14285715
        %v485 = vmul.f32 %v469, 0.14285715
        %v486 = vmul.f32 %v470, 0.14285715
        %v487 = vmul.f32 %v471, 0.14285715
        %v488 = vmul.f32 %v472, 0.14285715
        %v489 = vmul.f32 %v473, 0.14285715
        %v490 = vmul.f32 %v474, 0.14285715
        %v491 = vmul.f32 %v475, 0.14285715
        %v492 = vmul.f32 %v476, 0.14285715
        %v493 = vmul.f32 %v477, 0.14285715
        %v494 = vmul.f32 %v478, 0.14285715
        %v495 = vld [vmem:[#allocation5] sm:$0xff]
        %v496 = vld [vmem:[#allocation5 + $0x8] sm:$0xff]
        %v497 = vld [vmem:[#allocation5 + $0x10] sm:$0xff]
        %v498 = vld [vmem:[#allocation5 + $0x18] sm:$0xff]
        %v499 = vld [vmem:[#allocation5 + $0x20] sm:$0xff]
        %v500 = vld [vmem:[#allocation5 + $0x28] sm:$0xff]
        %v501 = vld [vmem:[#allocation5 + $0x30] sm:$0xff]
        %v502 = vld [vmem:[#allocation5 + $0x38] sm:$0xff]
        %v503 = vld [vmem:[#allocation5 + $0x40] sm:$0xff]
        %v504 = vld [vmem:[#allocation5 + $0x48] sm:$0xff]
        %v505 = vld [vmem:[#allocation5 + $0x50] sm:$0xff]
        %v506 = vld [vmem:[#allocation5 + $0x58] sm:$0xff]
        %v507 = vld [vmem:[#allocation5 + $0x60] sm:$0xff]
        %v508 = vld [vmem:[#allocation5 + $0x68] sm:$0xff]
        %v509 = vld [vmem:[#allocation5 + $0x70] sm:$0xff]
        %v510 = vld [vmem:[#allocation5 + $0x78] sm:$0xff]
        %v511 = vld [vmem:[%s2] sm:$0x1]
        %v513 = vperm.slane %v511, 0
        %515 = vmatpush.msra.mxu0 %v510
        %516 = vmatpush.msra.mxu0 %v509
        %517 = vmatpush.msra.mxu0 %v508
        %518 = vmatpush.msra.mxu0 %v507
        %519 = vmatpush.msra.mxu0 %v506
        %520 = vmatpush.msra.mxu0 %v505
        %521 = vmatpush.msra.mxu0 %v504
        %522 = vmatpush.msra.mxu0 %v503
        %523 = vmatpush.msra.mxu0 %v502
        %524 = vmatpush.msra.mxu0 %v501
        %525 = vmatpush.msra.mxu0 %v500
        %526 = vmatpush.msra.mxu0 %v499
        %527 = vmatpush.msra.mxu0 %v498
        %528 = vmatpush.msra.mxu0 %v497
        %529 = vmatpush.msra.mxu0 %v496
        %530 = vmatpush.msra.mxu0 %v495
        %531 = vmatmul.f32.gmra.mxu0 %v479
        %v532 = vpop.f32.mrf.mxu0
        %v533 = vadd.f32 %v513, %v532
        %534 = vmatmul.f32.gmra.mxu0 %v480
        %v535 = vpop.f32.mrf.mxu0
        %v536 = vadd.f32 %v513, %v535
        %537 = vmatmul.f32.gmra.mxu0 %v481
        %v538 = vpop.f32.mrf.mxu0
        %v539 = vadd.f32 %v513, %v538
        %540 = vmatmul.f32.gmra.mxu0 %v482
        %v541 = vpop.f32.mrf.mxu0
        %v542 = vadd.f32 %v513, %v541
        %543 = vmatmul.f32.gmra.mxu0 %v483
        %v544 = vpop.f32.mrf.mxu0
        %v545 = vadd.f32 %v513, %v544
        %546 = vmatmul.f32.gmra.mxu0 %v484
        %v547 = vpop.f32.mrf.mxu0
        %v548 = vadd.f32 %v513, %v547
        %549 = vmatmul.f32.gmra.mxu0 %v485
        %v550 = vpop.f32.mrf.mxu0
        %v551 = vadd.f32 %v513, %v550
        %552 = vmatmul.f32.gmra.mxu0 %v486
        %v553 = vpop.f32.mrf.mxu0
        %v554 = vadd.f32 %v513, %v553
        %555 = vmatmul.f32.gmra.mxu0 %v487
        %v556 = vpop.f32.mrf.mxu0
        %v557 = vadd.f32 %v513, %v556
        %558 = vmatmul.f32.gmra.mxu0 %v488
        %v559 = vpop.f32.mrf.mxu0
        %v560 = vadd.f32 %v513, %v559
        %561 = vmatmul.f32.gmra.mxu0 %v489
        %v562 = vpop.f32.mrf.mxu0
        %v563 = vadd.f32 %v513, %v562
        %564 = vmatmul.f32.gmra.mxu0 %v490
        %v565 = vpop.f32.mrf.mxu0
        %v566 = vadd.f32 %v513, %v565
        %567 = vmatmul.f32.gmra.mxu0 %v491
        %v568 = vpop.f32.mrf.mxu0
        %v569 = vadd.f32 %v513, %v568
        %570 = vmatmul.f32.gmra.mxu0 %v492
        %v571 = vpop.f32.mrf.mxu0
        %v572 = vadd.f32 %v513, %v571
        %573 = vmatmul.f32.gmra.mxu0 %v493
        %v574 = vpop.f32.mrf.mxu0
        %v575 = vadd.f32 %v513, %v574
        %576 = vmatmul.f32.gmra.mxu0 %v494
        %v577 = vpop.f32.mrf.mxu0
        %v578 = vadd.f32 %v513, %v577
        %579 = vdwg.mxu0
        %v580 = vmax.f32 %v533, 0.0
        %v581 = vmax.f32 %v536, 0.0
        %v582 = vmax.f32 %v539, 0.0
        %v583 = vmax.f32 %v542, 0.0
        %v584 = vmax.f32 %v545, 0.0
        %v585 = vmax.f32 %v548, 0.0
        %v586 = vmax.f32 %v551, 0.0
        %v587 = vmax.f32 %v554, 0.0
        %v588 = vmax.f32 %v557, 0.0
        %v589 = vmax.f32 %v560, 0.0
        %v590 = vmax.f32 %v563, 0.0
        %v591 = vmax.f32 %v566, 0.0
        %v592 = vmax.f32 %v569, 0.0
        %v593 = vmax.f32 %v572, 0.0
        %v594 = vmax.f32 %v575, 0.0
        %v595 = vmax.f32 %v578, 0.0
        %v596 = vrot.slane %v580, 4
        %v597 = vadd.f32 %v580, %v596
        %v598 = vrot.slane %v597, 2
        %v599 = vadd.f32 %v597, %v598
        %v600 = vrot.slane %v599, 1
        %v601 = vadd.f32 %v599, %v600
        %v602 = vrot.slane %v581, 4
        %v603 = vadd.f32 %v581, %v602
        %v604 = vrot.slane %v603, 2
        %v605 = vadd.f32 %v603, %v604
        %v606 = vrot.slane %v605, 1
        %v607 = vadd.f32 %v605, %v606
        %v608 = vrot.slane %v582, 4
        %v609 = vadd.f32 %v582, %v608
        %v610 = vrot.slane %v609, 2
        %v611 = vadd.f32 %v609, %v610
        %v612 = vrot.slane %v611, 1
        %v613 = vadd.f32 %v611, %v612
        %v614 = vrot.slane %v583, 4
        %v615 = vadd.f32 %v583, %v614
        %v616 = vrot.slane %v615, 2
        %v617 = vadd.f32 %v615, %v616
        %v618 = vrot.slane %v617, 1
        %v619 = vadd.f32 %v617, %v618
        %v620 = vrot.slane %v584, 4
        %v621 = vadd.f32 %v584, %v620
        %v622 = vrot.slane %v621, 2
        %v623 = vadd.f32 %v621, %v622
        %v624 = vrot.slane %v623, 1
        %v625 = vadd.f32 %v623, %v624
        %v626 = vrot.slane %v585, 4
        %v627 = vadd.f32 %v585, %v626
        %v628 = vrot.slane %v627, 2
        %v629 = vadd.f32 %v627, %v628
        %v630 = vrot.slane %v629, 1
        %v631 = vadd.f32 %v629, %v630
        %v632 = vrot.slane %v586, 4
        %v633 = vadd.f32 %v586, %v632
        %v634 = vrot.slane %v633, 2
        %v635 = vadd.f32 %v633, %v634
        %v636 = vrot.slane %v635, 1
        %v637 = vadd.f32 %v635, %v636
        %v638 = vrot.slane %v587, 4
        %v639 = vadd.f32 %v587, %v638
        %v640 = vrot.slane %v639, 2
        %v641 = vadd.f32 %v639, %v640
        %v642 = vrot.slane %v641, 1
        %v643 = vadd.f32 %v641, %v642
        %v644 = vrot.slane %v588, 4
        %v645 = vadd.f32 %v588, %v644
        %v646 = vrot.slane %v645, 2
        %v647 = vadd.f32 %v645, %v646
        %v648 = vrot.slane %v647, 1
        %v649 = vadd.f32 %v647, %v648
        %v650 = vrot.slane %v589, 4
        %v651 = vadd.f32 %v589, %v650
        %v652 = vrot.slane %v651, 2
        %v653 = vadd.f32 %v651, %v652
        %v654 = vrot.slane %v653, 1
        %v655 = vadd.f32 %v653, %v654
        %v656 = vrot.slane %v590, 4
        %v657 = vadd.f32 %v590, %v656
        %v658 = vrot.slane %v657, 2
        %v659 = vadd.f32 %v657, %v658
        %v660 = vrot.slane %v659, 1
        %v661 = vadd.f32 %v659, %v660
        %v662 = vrot.slane %v591, 4
        %v663 = vadd.f32 %v591, %v662
        %v664 = vrot.slane %v663, 2
        %v665 = vadd.f32 %v663, %v664
        %v666 = vrot.slane %v665, 1
        %v667 = vadd.f32 %v665, %v666
        %v668 = vrot.slane %v592, 4
        %v669 = vadd.f32 %v592, %v668
        %v670 = vrot.slane %v669, 2
        %v671 = vadd.f32 %v669, %v670
        %v672 = vrot.slane %v671, 1
        %v673 = vadd.f32 %v671, %v672
        %v674 = vrot.slane %v593, 4
        %v675 = vadd.f32 %v593, %v674
        %v676 = vrot.slane %v675, 2
        %v677 = vadd.f32 %v675, %v676
        %v678 = vrot.slane %v677, 1
        %v679 = vadd.f32 %v677, %v678
        %v680 = vrot.slane %v594, 4
        %v681 = vadd.f32 %v594, %v680
        %v682 = vrot.slane %v681, 2
        %v683 = vadd.f32 %v681, %v682
        %v684 = vrot.slane %v683, 1
        %v685 = vadd.f32 %v683, %v684
        %v686 = vrot.slane %v595, 4
        %v687 = vadd.f32 %v595, %v686
        %v688 = vrot.slane %v687, 2
        %v689 = vadd.f32 %v687, %v688
        %v690 = vrot.slane %v689, 1
        %v691 = vadd.f32 %v689, %v690
        %v692 = vsub.f32 %v601, %v580
        %v693 = vsub.f32 %v607, %v581
        %v694 = vsub.f32 %v613, %v582
        %v695 = vsub.f32 %v619, %v583
        %v696 = vsub.f32 %v625, %v584
        %v697 = vsub.f32 %v631, %v585
        %v698 = vsub.f32 %v637, %v586
        %v699 = vsub.f32 %v643, %v587
        %v700 = vsub.f32 %v649, %v588
        %v701 = vsub.f32 %v655, %v589
        %v702 = vsub.f32 %v661, %v590
        %v703 = vsub.f32 %v667, %v591
        %v704 = vsub.f32 %v673, %v592
        %v705 = vsub.f32 %v679, %v593
        %v706 = vsub.f32 %v685, %v594
        %v707 = vsub.f32 %v691, %v595
        %v708 = vmul.f32 %v692, 0.14285715
        %v709 = vmul.f32 %v693, 0.14285715
        %v710 = vmul.f32 %v694, 0.14285715
        %v711 = vmul.f32 %v695, 0.14285715
        %v712 = vmul.f32 %v696, 0.14285715
        %v713 = vmul.f32 %v697, 0.14285715
        %v714 = vmul.f32 %v698, 0.14285715
        %v715 = vmul.f32 %v699, 0.14285715
        %v716 = vmul.f32 %v700, 0.14285715
        %v717 = vmul.f32 %v701, 0.14285715
        %v718 = vmul.f32 %v702, 0.14285715
        %v719 = vmul.f32 %v703, 0.14285715
        %v720 = vmul.f32 %v704, 0.14285715
        %v721 = vmul.f32 %v705, 0.14285715
        %v722 = vmul.f32 %v706, 0.14285715
        %v723 = vmul.f32 %v707, 0.14285715
        %v724 = vld [vmem:[#allocation7] sm:$0xff]
        %v725 = vld [vmem:[#allocation7 + $0x8] sm:$0xff]
        %v726 = vld [vmem:[#allocation7 + $0x10] sm:$0xff]
        %v727 = vld [vmem:[#allocation7 + $0x18] sm:$0xff]
        %v728 = vld [vmem:[#allocation7 + $0x20] sm:$0xff]
        %v729 = vld [vmem:[#allocation7 + $0x28] sm:$0xff]
        %v730 = vld [vmem:[#allocation7 + $0x30] sm:$0xff]
        %v731 = vld [vmem:[#allocation7 + $0x38] sm:$0xff]
        %v732 = vld [vmem:[#allocation7 + $0x40] sm:$0xff]
        %v733 = vld [vmem:[#allocation7 + $0x48] sm:$0xff]
        %v734 = vld [vmem:[#allocation7 + $0x50] sm:$0xff]
        %v735 = vld [vmem:[#allocation7 + $0x58] sm:$0xff]
        %v736 = vld [vmem:[#allocation7 + $0x60] sm:$0xff]
        %v737 = vld [vmem:[#allocation7 + $0x68] sm:$0xff]
        %v738 = vld [vmem:[#allocation7 + $0x70] sm:$0xff]
        %v739 = vld [vmem:[#allocation7 + $0x78] sm:$0xff]
        %v740 = vld [vmem:[%s4] sm:$0x1]
        %v742 = vperm.slane %v740, 0
        %744 = vmatpush.msra.mxu0 %v739
        %745 = vmatpush.msra.mxu0 %v738
        %746 = vmatpush.msra.mxu0 %v737
        %747 = vmatpush.msra.mxu0 %v736
        %748 = vmatpush.msra.mxu0 %v735
        %749 = vmatpush.msra.mxu0 %v734
        %750 = vmatpush.msra.mxu0 %v733
        %751 = vmatpush.msra.mxu0 %v732
        %752 = vmatpush.msra.mxu0 %v731
        %753 = vmatpush.msra.mxu0 %v730
        %754 = vmatpush.msra.mxu0 %v729
        %755 = vmatpush.msra.mxu0 %v728
        %756 = vmatpush.msra.mxu0 %v727
        %757 = vmatpush.msra.mxu0 %v726
        %758 = vmatpush.msra.mxu0 %v725
        %759 = vmatpush.msra.mxu0 %v724
        %760 = vmatmul.f32.gmra.mxu0 %v708
        %v761 = vpop.f32.mrf.mxu0
        %v762 = vadd.f32 %v742, %v761
        %763 = vmatmul.f32.gmra.mxu0 %v709
        %v764 = vpop.f32.mrf.mxu0
        %v765 = vadd.f32 %v742, %v764
        %766 = vmatmul.f32.gmra.mxu0 %v710
        %v767 = vpop.f32.mrf.mxu0
        %v768 = vadd.f32 %v742, %v767
        %769 = vmatmul.f32.gmra.mxu0 %v711
        %v770 = vpop.f32.mrf.mxu0
        %v771 = vadd.f32 %v742, %v770
        %772 = vmatmul.f32.gmra.mxu0 %v712
        %v773 = vpop.f32.mrf.mxu0
        %v774 = vadd.f32 %v742, %v773
        %775 = vmatmul.f32.gmra.mxu0 %v713
        %v776 = vpop.f32.mrf.mxu0
        %v777 = vadd.f32 %v742, %v776
        %778 = vmatmul.f32.gmra.mxu0 %v714
        %v779 = vpop.f32.mrf.mxu0
        %v780 = vadd.f32 %v742, %v779
        %781 = vmatmul.f32.gmra.mxu0 %v715
        %v782 = vpop.f32.mrf.mxu0
        %v783 = vadd.f32 %v742, %v782
        %784 = vmatmul.f32.gmra.mxu0 %v716
        %v785 = vpop.f32.mrf.mxu0
        %v786 = vadd.f32 %v742, %v785
        %787 = vmatmul.f32.gmra.mxu0 %v717
        %v788 = vpop.f32.mrf.mxu0
        %v789 = vadd.f32 %v742, %v788
        %790 = vmatmul.f32.gmra.mxu0 %v718
        %v791 = vpop.f32.mrf.mxu0
        %v792 = vadd.f32 %v742, %v791
        %793 = vmatmul.f32.gmra.mxu0 %v719
        %v794 = vpop.f32.mrf.mxu0
        %v795 = vadd.f32 %v742, %v794
        %796 = vmatmul.f32.gmra.mxu0 %v720
        %v797 = vpop.f32.mrf.mxu0
        %v798 = vadd.f32 %v742, %v797
        %799 = vmatmul.f32.gmra.mxu0 %v721
        %v800 = vpop.f32.mrf.mxu0
        %v801 = vadd.f32 %v742, %v800
        %802 = vmatmul.f32.gmra.mxu0 %v722
        %v803 = vpop.f32.mrf.mxu0
        %v804 = vadd.f32 %v742, %v803
        %805 = vmatmul.f32.gmra.mxu0 %v723
        %v806 = vpop.f32.mrf.mxu0
        %v807 = vadd.f32 %v742, %v806
        %808 = vdwg.mxu0
        %v809 = vmax.f32 %v762, 0.0
        %v810 = vmax.f32 %v765, 0.0
        %v811 = vmax.f32 %v768, 0.0
        %v812 = vmax.f32 %v771, 0.0
        %v813 = vmax.f32 %v774, 0.0
        %v814 = vmax.f32 %v777, 0.0
        %v815 = vmax.f32 %v780, 0.0
        %v816 = vmax.f32 %v783, 0.0
        %v817 = vmax.f32 %v786, 0.0
        %v818 = vmax.f32 %v789, 0.0
        %v819 = vmax.f32 %v792, 0.0
        %v820 = vmax.f32 %v795, 0.0
        %v821 = vmax.f32 %v798, 0.0
        %v822 = vmax.f32 %v801, 0.0
        %v823 = vmax.f32 %v804, 0.0
        %v824 = vmax.f32 %v807, 0.0
        %v825 = vrot.slane %v809, 4
        %v826 = vadd.f32 %v809, %v825
        %v827 = vrot.slane %v826, 2
        %v828 = vadd.f32 %v826, %v827
        %v829 = vrot.slane %v828, 1
        %v830 = vadd.f32 %v828, %v829
        %v831 = vrot.slane %v810, 4
        %v832 = vadd.f32 %v810, %v831
        %v833 = vrot.slane %v832, 2
        %v834 = vadd.f32 %v832, %v833
        %v835 = vrot.slane %v834, 1
        %v836 = vadd.f32 %v834, %v835
        %v837 = vrot.slane %v811, 4
        %v838 = vadd.f32 %v811, %v837
        %v839 = vrot.slane %v838, 2
        %v840 = vadd.f32 %v838, %v839
        %v841 = vrot.slane %v840, 1
        %v842 = vadd.f32 %v840, %v841
        %v843 = vrot.slane %v812, 4
        %v844 = vadd.f32 %v812, %v843
        %v845 = vrot.slane %v844, 2
        %v846 = vadd.f32 %v844, %v845
        %v847 = vrot.slane %v846, 1
        %v848 = vadd.f32 %v846, %v847
        %v849 = vrot.slane %v813, 4
        %v850 = vadd.f32 %v813, %v849
        %v851 = vrot.slane %v850, 2
        %v852 = vadd.f32 %v850, %v851
        %v853 = vrot.slane %v852, 1
        %v854 = vadd.f32 %v852, %v853
        %v855 = vrot.slane %v814, 4
        %v856 = vadd.f32 %v814, %v855
        %v857 = vrot.slane %v856, 2
        %v858 = vadd.f32 %v856, %v857
        %v859 = vrot.slane %v858, 1
        %v860 = vadd.f32 %v858, %v859
        %v861 = vrot.slane %v815, 4
        %v862 = vadd.f32 %v815, %v861
        %v863 = vrot.slane %v862, 2
        %v864 = vadd.f32 %v862, %v863
        %v865 = vrot.slane %v864, 1
        %v866 = vadd.f32 %v864, %v865
        %v867 = vrot.slane %v816, 4
        %v868 = vadd.f32 %v816, %v867
        %v869 = vrot.slane %v868, 2
        %v870 = vadd.f32 %v868, %v869
        %v871 = vrot.slane %v870, 1
        %v872 = vadd.f32 %v870, %v871
        %v873 = vrot.slane %v817, 4
        %v874 = vadd.f32 %v817, %v873
        %v875 = vrot.slane %v874, 2
        %v876 = vadd.f32 %v874, %v875
        %v877 = vrot.slane %v876, 1
        %v878 = vadd.f32 %v876, %v877
        %v879 = vrot.slane %v818, 4
        %v880 = vadd.f32 %v818, %v879
        %v881 = vrot.slane %v880, 2
        %v882 = vadd.f32 %v880, %v881
        %v883 = vrot.slane %v882, 1
        %v884 = vadd.f32 %v882, %v883
        %v885 = vrot.slane %v819, 4
        %v886 = vadd.f32 %v819, %v885
        %v887 = vrot.slane %v886, 2
        %v888 = vadd.f32 %v886, %v887
        %v889 = vrot.slane %v888, 1
        %v890 = vadd.f32 %v888, %v889
        %v891 = vrot.slane %v820, 4
        %v892 = vadd.f32 %v820, %v891
        %v893 = vrot.slane %v892, 2
        %v894 = vadd.f32 %v892, %v893
        %v895 = vrot.slane %v894, 1
        %v896 = vadd.f32 %v894, %v895
        %v897 = vrot.slane %v821, 4
        %v898 = vadd.f32 %v821, %v897
        %v899 = vrot.slane %v898, 2
        %v900 = vadd.f32 %v898, %v899
        %v901 = vrot.slane %v900, 1
        %v902 = vadd.f32 %v900, %v901
        %v903 = vrot.slane %v822, 4
        %v904 = vadd.f32 %v822, %v903
        %v905 = vrot.slane %v904, 2
        %v906 = vadd.f32 %v904, %v905
        %v907 = vrot.slane %v906, 1
        %v908 = vadd.f32 %v906, %v907
        %v909 = vrot.slane %v823, 4
        %v910 = vadd.f32 %v823, %v909
        %v911 = vrot.slane %v910, 2
        %v912 = vadd.f32 %v910, %v911
        %v913 = vrot.slane %v912, 1
        %v914 = vadd.f32 %v912, %v913
        %v915 = vrot.slane %v824, 4
        %v916 = vadd.f32 %v824, %v915
        %v917 = vrot.slane %v916, 2
        %v918 = vadd.f32 %v916, %v917
        %v919 = vrot.slane %v918, 1
        %v920 = vadd.f32 %v918, %v919
        %v921 = vrcp.pop 8.0
        %v922 = vmul.f32 8.0, %v921
        %v923 = vsub.f32 1.0, %v922
        %v924 = vmul.f32 %v921, %v923
        %v925 = vadd.f32 %v921, %v924
        %vm926 = vweird.f32 %v921
        %v927 = vsel %vm926, %v921, %v925
        %v928 = vmul.f32 %v830, %v927
        %v929 = vmul.f32 %v836, %v927
        %v930 = vmul.f32 %v842, %v927
        %v931 = vmul.f32 %v848, %v927
        %v932 = vmul.f32 %v854, %v927
        %v933 = vmul.f32 %v860, %v927
        %v934 = vmul.f32 %v866, %v927
        %v935 = vmul.f32 %v872, %v927
        %v936 = vmul.f32 %v878, %v927
        %v937 = vmul.f32 %v884, %v927
        %v938 = vmul.f32 %v890, %v927
        %v939 = vmul.f32 %v896, %v927
        %v940 = vmul.f32 %v902, %v927
        %v941 = vmul.f32 %v908, %v927
        %v942 = vmul.f32 %v914, %v927
        %v943 = vmul.f32 %v920, %v927
        %v944 = vld [vmem:[#allocation8] sm:$0xff]
        %v945 = vld [vmem:[#allocation8 + $0x8] sm:$0xff]
        %v946 = vld [vmem:[#allocation8 + $0x10] sm:$0xff]
        %v947 = vld [vmem:[#allocation8 + $0x18] sm:$0xff]
        %v948 = vld [vmem:[#allocation8 + $0x20] sm:$0xff]
        %v949 = vld [vmem:[#allocation8 + $0x28] sm:$0xff]
        %v950 = vld [vmem:[#allocation8 + $0x30] sm:$0xff]
        %v951 = vld [vmem:[#allocation8 + $0x38] sm:$0xff]
        %v952 = vld [vmem:[#allocation8 + $0x40] sm:$0xff]
        %v953 = vld [vmem:[#allocation8 + $0x48] sm:$0xff]
        %v954 = vld [vmem:[#allocation8 + $0x50] sm:$0xff]
        %v955 = vld [vmem:[#allocation8 + $0x58] sm:$0xff]
        %v956 = vld [vmem:[#allocation8 + $0x60] sm:$0xff]
        %v957 = vld [vmem:[#allocation8 + $0x68] sm:$0xff]
        %v958 = vld [vmem:[#allocation8 + $0x70] sm:$0xff]
        %v959 = vld [vmem:[#allocation8 + $0x78] sm:$0xff]
        %v960 = vld [vmem:[%s6] sm:$0x1]
        %v962 = vperm.slane %v960, 0
        %vm980 = vcmask 1041409
        %v981 = vsel %vm980, %v929, %v928
        %vm982 = vcmask 1042434
        %v983 = vsel %vm982, %v930, %v981
        %vm984 = vcmask 1043459
        %v985 = vsel %vm984, %v931, %v983
        %vm986 = vcmask 1044484
        %v987 = vsel %vm986, %v932, %v985
        %vm988 = vcmask 1045509
        %v989 = vsel %vm988, %v933, %v987
        %vm990 = vcmask 1046534
        %v991 = vsel %vm990, %v934, %v989
        %vm992 = vcmask 1047559
        %v993 = vsel %vm992, %v935, %v991
        %v994 = vsel %vm980, %v937, %v936
        %v995 = vsel %vm982, %v938, %v994
        %v996 = vsel %vm984, %v939, %v995
        %v997 = vsel %vm986, %v940, %v996
        %v998 = vsel %vm988, %v941, %v997
        %v999 = vsel %vm990, %v942, %v998
        %v1000 = vsel %vm992, %v943, %v999
        %1003 = vmatpush.msra.mxu0 %v959
        %1004 = vmatpush.msra.mxu0 %v958
        %1005 = vmatpush.msra.mxu0 %v957
        %1006 = vmatpush.msra.mxu0 %v956
        %1007 = vmatpush.msra.mxu0 %v955
        %1008 = vmatpush.msra.mxu0 %v954
        %1009 = vmatpush.msra.mxu0 %v953
        %1010 = vmatpush.msra.mxu0 %v952
        %1011 = vmatpush.msra.mxu0 %v951
        %1012 = vmatpush.msra.mxu0 %v950
        %1013 = vmatpush.msra.mxu0 %v949
        %1014 = vmatpush.msra.mxu0 %v948
        %1015 = vmatpush.msra.mxu0 %v947
        %1016 = vmatpush.msra.mxu0 %v946
        %1017 = vmatpush.msra.mxu0 %v945
        %1018 = vmatpush.msra.mxu0 %v944
        %1019 = vmatmul.f32.gmra.mxu0 %v993
        %v1020 = vpop.f32.mrf.mxu0
        %v1021 = vadd.f32 %v962, %v1020
        %1022 = vmatmul.f32.gmra.mxu0 %v1000
        %v1023 = vpop.f32.mrf.mxu0
        %v1024 = vadd.f32 %v962, %v1023
        %1025 = vdwg.mxu0
        %v1026 = vsub.f32 0.0, %v1021
        %v1027 = vsub.f32 0.0, %v1024
        %v1028 = vmul.f32 %v1026, 1.442695
        %v1029 = vpow.pop %v1028
        %v1030 = vmul.f32 %v1027, 1.442695
        %v1031 = vpow.pop %v1030
        %v1032 = vadd.f32 %v1029, 1.0
        %v1033 = vadd.f32 %v1031, 1.0
        %v1034 = vrcp.pop %v1032
        %v1035 = vmul.f32 %v1032, %v1034
        %v1036 = vsub.f32 1.0, %v1035
        %v1037 = vmul.f32 %v1034, %v1036
        %v1038 = vadd.f32 %v1034, %v1037
        %vm1039 = vweird.f32 %v1032
        %vm1040 = vweird.f32 %v1034
        %vm1041 = vmor %vm1039, %vm1040
        %v1042 = vsel %vm1041, %v1034, %v1038
        %v1043 = vand.u32 2147483647, %v1032
        %vm1044 = vcmp.eq.f32.partialorder %v1043, 8.507059e+37
        %v1045 = vand.u32 %v1032, 2147483648
        %v1046 = vor.u32 1.1754944e-38, %v1045
        %v1047 = vsel %vm1044, %v1046, %v1042
        %v1048 = vmul.f32 1.0, %v1047
        %v1049 = vrcp.pop %v1033
        %v1050 = vmul.f32 %v1033, %v1049
        %v1051 = vsub.f32 1.0, %v1050
        %v1052 = vmul.f32 %v1049, %v1051
        %v1053 = vadd.f32 %v1049, %v1052
        %vm1054 = vweird.f32 %v1033
        %vm1055 = vweird.f32 %v1049
        %vm1056 = vmor %vm1054, %vm1055
        %v1057 = vsel %vm1056, %v1049, %v1053
        %v1058 = vand.u32 2147483647, %v1033
        %vm1059 = vcmp.eq.f32.partialorder %v1058, 8.507059e+37
        %v1060 = vand.u32 %v1033, 2147483648
        %v1061 = vor.u32 1.1754944e-38, %v1060
        %v1062 = vsel %vm1059, %v1061, %v1057
        %v1063 = vmul.f32 1.0, %v1062
        %1064 = vst [vmem:[%s348] sm:$0xff] %v1048
        %1065 = vst [vmem:[%s348 + $0x8] sm:$0xff] %v1063
        %s1066 = sand.u32 %s186, 1
        %s1067 = scalar_lea.sflag [#allocation4], %s1066
        %s1068 = sand.u32 %s186, 1
        %s1069 = smul.addr %s1068, 16
        %s1070 = scalar_lea.vmem [#allocation10], %s1069
        // Predicated region
        $region65: #{tpu_custom_call.1} parent=47 // pred_check
          %p1071 = pneg %p196
        $region66: #{tpu_custom_call.1} parent=47 // pred_check_branch
          %1073 = sbr.rel (%p1071) target = $region68
        $region67: #{tpu_custom_call.1} parent=47 // pred_region
          %s1074 = smul.u32 2, %s26
          %1076 = vsyncadd %s1067, 0
          %s1077 = smul.addr %s1074, 8
          %s1078 = scalar_lea.hbm %s7, %s1077
          %s1079 = sshll.u32 %s1070, 4
          %s1080 = int_to_ptr.vmem [resolvable:$true] %s1079
          %s1081 = sshll.u32 %s1078, 4
          %s1082 = int_to_ptr.hbm [resolvable:$true] %s1081
          %1087 = dma.vmem_to_hbm [thread:$0]  %s1080, 256, %s1082, %s1067, 128, 128, 8
        $region68: #{tpu_custom_call.1} parent=47 // pred_fallthru
          _
      $region48: #{tpu_custom_call.1} parent=5 // pred_fallthru
        _
      %p1088 = scmp.le.s32.totalorder 2, %s21
      // Predicated region
      $region69: #{tpu_custom_call.1} parent=5 // pred_check
        %p1089 = pneg %p1088
      $region70: #{tpu_custom_call.1} parent=5 // pred_check_branch
        %1091 = sbr.rel (%p1089) target = $region72
      $region71: #{tpu_custom_call.1} parent=5 // pred_region
        %s1092 = ssub.s32 %s21, 2
        // Predicated region
        $region73: #{tpu_custom_call.1} parent=71 // pred_check
          %p1093 = pneg %p202
        $region74: #{tpu_custom_call.1} parent=71 // pred_check_branch
          %1095 = sbr.rel (%p1093) target = $region76
        $region75: #{tpu_custom_call.1} parent=71 // pred_region
          %s1096 = sand.u32 %s187, 1
          %s1097 = scalar_lea.sflag [#allocation4], %s1096
          %s1098 = sand.u32 %s187, 1
          %s1099 = smul.addr %s1098, 16
          %s1100 = scalar_lea.vmem [#allocation10], %s1099
          %1102 = dma.done %s1097, 256
        $region76: #{tpu_custom_call.1} parent=71 // pred_fallthru
          _
      $region72: #{tpu_custom_call.1} parent=5 // pred_fallthru
        _
    $region6: #{tpu_custom_call.1} parent=1 // loop_footer
      %s25 = sadd.s32 1, %s21
    $region7: #{tpu_custom_call.1} parent=1 // loop_footer_branch
      %20 = sbr.rel target = $region3
    $region8: #{tpu_custom_call.1} parent=1 // loop_exit
      _
    %1103 = vsyncpa [#allocation3], 1
    %s1104 = scalar_lea.sflag [#allocation3], 1
    %1105 = vsyncpa %s1104, 1
    %1106 = vsyncpa [#allocation6], 1
    %1107 = vsyncpa [#allocation9], 1
    %1108 = vsyncpa [#allocation4], 1
    %s1109 = scalar_lea.sflag [#allocation4], 1
    %1110 = vsyncpa %s1109, 1

</llo_original>
